<compile_context>
chip_gen: v5e
topology: v5e:2x2
jax: 0.10.0
libtpu: 0.0.40
codegen_flags: <defaults>
</compile_context>

<pallas_src>
import jax
import jax.numpy as jnp
from jax.experimental import pallas as pl
from jax.experimental.pallas import tpu as pltpu

# Standard L0/hard-concrete constants (Louizos et al.), module-level in the original file.
LIMIT_A = -0.1
LIMIT_B = 1.1
EPSILON = 1e-6
TEMPERATURE = 2.0 / 3.0

# Tile caps: 256 rows (multiple of 8/16/32 sublanes -> legal for f32/bf16/int8) x 2048
# lanes (multiple of 128).  256*2048*4B = 2 MiB per f32 x-tile; with double-buffered
# input + output that is ~8 MiB live -> safe on v5e (16 MiB scoped default), v6e, v7x.
_TR_MAX = 256
_THW_MAX = 2048


def _gate_mul_kernel(z_ref, x_ref, o_ref):
    # z_ref: (TR, 1) per-row gate; x_ref / o_ref: (TR, THW).
    # Pure broadcast multiply over lanes; explicit cast so bf16 outputs lower cleanly.
    o_ref[...] = (x_ref[...] * z_ref[...]).astype(o_ref.dtype)


def _hard_concrete_gate(qz_loga, eps=None):
    """Per-(batch, channel) hard-concrete gate in f32.  O(N*C) work -> plain JAX."""
    qz = qz_loga.astype(jnp.float32)
    if eps is not None:
        e = eps.astype(jnp.float32)
        y = jax.nn.sigmoid((jnp.log(e) - jnp.log(1.0 - e) + qz[None, :]) / TEMPERATURE)
    else:
        y = jax.nn.sigmoid(qz)[None, :]
    return jnp.clip(y * (LIMIT_B - LIMIT_A) + LIMIT_A, 0.0, 1.0)   # (N, C) or (1, C)


def sparse_channel_forward(x, qz_loga, eps=None):
    """x: (N, C, H, W); qz_loga: (C,); eps: (N, C) uniform noise (training) or None (eval)."""
    N, C, H, W = x.shape
    HW = H * W
    rows = N * C

    # Precompute the gate (f32 math), broadcast to every row, cast to the activation dtype.
    z = _hard_concrete_gate(qz_loga, eps)                              # (N or 1, C)
    z = jnp.broadcast_to(z, (N, C)).reshape(rows, 1).astype(x.dtype)   # (N*C, 1)

    x2 = x.reshape(rows, HW)

    # Full-extent blocks when small (always legal), capped tiles otherwise.
    tr = rows if rows <= _TR_MAX else _TR_MAX
    thw = HW if HW <= _THW_MAX else _THW_MAX
    grid = (pl.cdiv(rows, tr), pl.cdiv(HW, thw))

    out = pl.pallas_call(
        _gate_mul_kernel,
        out_shape=jax.ShapeDtypeStruct((rows, HW), x.dtype),
        grid_spec=pltpu.PrefetchScalarGridSpec(
            num_scalar_prefetch=0,
            grid=grid,
            in_specs=[
                pl.BlockSpec((tr, 1), lambda i, j: (i, 0)),      # per-row gate
                pl.BlockSpec((tr, thw), lambda i, j: (i, j)),    # activation tile
            ],
            out_specs=pl.BlockSpec((tr, thw), lambda i, j: (i, j)),
        ),
        compiler_params=pltpu.CompilerParams(
            # Both axes independent -> shard across the two v7x TensorCores; harmless on
            # single-TC v5e/v6e.
            dimension_semantics=("parallel", "parallel"),
        ),
    )(z, x2)

    return out.reshape(N, C, H, W)


def _ref_forward(x, qz_loga, eps=None):
    """Pure-JAX reference mirroring the PyTorch forward."""
    if eps is not None:
        y = jax.nn.sigmoid(
            (jnp.log(eps) - jnp.log(1.0 - eps) + qz_loga[None, :]) / TEMPERATURE
        )
        z = jnp.clip(y * (LIMIT_B - LIMIT_A) + LIMIT_A, 0.0, 1.0)[:, :, None, None]
    else:
        pi = jax.nn.sigmoid(qz_loga)
        z = jnp.clip(pi * (LIMIT_B - LIMIT_A) + LIMIT_A, 0.0, 1.0)[None, :, None, None]
    return x * z


if __name__ == "__main__":
    key = jax.random.PRNGKey(0)
    k_x, k_qz, k_eps, k_x2 = jax.random.split(key, 4)

    # Small shape consistent with the module (NCHW).
    N, C, H, W = 2, 4, 16, 16
    x = jax.random.normal(k_x, (N, C, H, W), dtype=jnp.float32)
    # qz_loga.data.normal_(3.0, 0.01) in the module __init__.
    qz_loga = 3.0 + 0.01 * jax.random.normal(k_qz, (C,), dtype=jnp.float32)
    # Uniform noise for the training-mode (sample=True) path, supplied explicitly
    # (the module draws it with get_eps; here the PRNG lives in the wrapper's caller).
    eps = jax.random.uniform(
        k_eps, (N, C), dtype=jnp.float32, minval=EPSILON, maxval=1.0 - EPSILON
    )

    # Training-mode (stochastic gates) and eval-mode paths.
    out_train = sparse_channel_forward(x, qz_loga, eps=eps)
    out_eval = sparse_channel_forward(x, qz_loga, eps=None)
    jax.block_until_ready((out_train, out_eval))

    ref_train = _ref_forward(x, qz_loga, eps=eps)
    ref_eval = _ref_forward(x, qz_loga, eps=None)

    assert out_train.shape == (N, C, H, W) and out_eval.shape == (N, C, H, W)
    assert jnp.allclose(out_train, ref_train, atol=1e-5, rtol=1e-5)
    assert jnp.allclose(out_eval, ref_eval, atol=1e-5, rtol=1e-5)

    # Larger feature map exercising the multi-tile lane grid (HW = 4096 > 2048).
    N2, C2, H2, W2 = 2, 16, 64, 64
    x_big = jax.random.normal(k_x2, (N2, C2, H2, W2), dtype=jnp.float32)
    qz_big = 3.0 + 0.01 * jax.random.normal(k_qz, (C2,), dtype=jnp.float32)
    out_big = sparse_channel_forward(x_big, qz_big, eps=None)
    jax.block_until_ready(out_big)
    assert jnp.allclose(out_big, _ref_forward(x_big, qz_big, eps=None), atol=1e-5, rtol=1e-5)

    # TODO(synk): regularization()/cdf_qz()/constrain_parameters() are training-loss /
    # parameter-maintenance utilities, not part of the forward pass, and are left out.

    print("KERNEL_OK")
</pallas_src>

<mosaic_0001>
module attributes {stable_mosaic.version = 11 : i64} {
  func.func @_gate_mul_kernel(%arg0: i32, %arg1: i32, %arg2: memref<8x1xf32, #tpu.memory_space<vmem>>, %arg3: memref<8x256xf32, #tpu.memory_space<vmem>>, %arg4: memref<8x256xf32, #tpu.memory_space<vmem>>) attributes {dimension_semantics = [#tpu.dimension_semantics<parallel>, #tpu.dimension_semantics<parallel>], iteration_bounds = array<i64: 1, 1>, scalar_prefetch = 0 : i64, scratch_operands = 0 : i64, tpu.core_type = #tpu.core_type<tc>, window_params = [{transform_indices = @transform_0, window_bounds = array<i64: 8, 1>}, {transform_indices = @transform_1, window_bounds = array<i64: 8, 256>}, {transform_indices = @transform_2, window_bounds = array<i64: 8, 256>}]} {
    %c0 = arith.constant 0 : index
    %c0_0 = arith.constant 0 : index
    %0 = vector.load %arg3[%c0, %c0_0] : memref<8x256xf32, #tpu.memory_space<vmem>>, vector<8x256xf32>
    %c0_1 = arith.constant 0 : index
    %c0_2 = arith.constant 0 : index
    %1 = vector.load %arg2[%c0_1, %c0_2] : memref<8x1xf32, #tpu.memory_space<vmem>>, vector<8x1xf32>
    %2 = vector.broadcast %1 : vector<8x1xf32> to vector<8x256xf32>
    %3 = arith.mulf %0, %2 : vector<8x256xf32>
    %c0_3 = arith.constant 0 : index
    %c0_4 = arith.constant 0 : index
    %4 = vector.load %arg4[%c0_3, %c0_4] : memref<8x256xf32, #tpu.memory_space<vmem>>, vector<8x256xf32>
    tpu.vector_store %arg4[%c0_3, %c0_4], %3 {strides = array<i32>} : memref<8x256xf32, #tpu.memory_space<vmem>>, vector<8x256xf32>,
    return
  }
  func.func @transform_0(%arg0: i32, %arg1: i32) -> (i32, i32) {
    %c0_i32 = arith.constant 0 : i32
    %c0_i32_0 = arith.constant 0 : i32
    return %arg0, %c0_i32 : i32, i32
  }
  func.func @transform_1(%arg0: i32, %arg1: i32) -> (i32, i32) {
    %c0_i32 = arith.constant 0 : i32
    return %arg0, %arg1 : i32, i32
  }
  func.func @transform_2(%arg0: i32, %arg1: i32) -> (i32, i32) {
    %c0_i32 = arith.constant 0 : i32
    return %arg0, %arg1 : i32, i32
  }
}

</mosaic_0001>

<llo_original>
// kernel: tpu_custom_call.1
$region0: #{tpu_custom_call.1}
  #allocation0 [shape = 'u32[]', space=smem, size = 0x4, offset = 0x4, fixed_abs, tag = 'smem constant byte address 0x4 - core index']
  #allocation1 [shape = 'u32[72,128]{1,0:T(1,128)}', space=vmem, size = 0x9000, scoped, tag = 'internal scratch']
  %s0 = inlined_call_operand.vmem [shape: f32[8,1], index: 0, kind: input, shape index: {}]
  %s1 = inlined_call_operand.hbm [shape: f32[8,256], index: 1, kind: input, shape index: {}]
  %s2 = inlined_call_operand.hbm [shape: f32[8,256], index: 2, kind: output, shape index: {}]
  %s3 = sld [smem:[#allocation0]]
  $region22: #{tpu_custom_call.1} parent=0
    _
  %s5 = ssub.s32 1, %s3
  %s6 = scalar_select 0, %s5, %s3
  $region1: #{tpu_custom_call.1} parent=0
    #allocation2 [shape = 'u8[8192]{0}', space=vmem, size = 0x2000, scoped, tag = 'input window, operand 1, single buffered']
    #allocation3 [shape = 's32[1]{0}', space=sflag, size = 0x4, scoped, tag = 'scoped memory for tpu_custom_call.1']
    #allocation4 [shape = 's32[1]{0}', space=sflag, size = 0x4, scoped, tag = 'scoped memory for tpu_custom_call.1']
    #allocation5 [shape = 'u8[8192]{0}', space=vmem, size = 0x2000, scoped, tag = 'output window, operand 0, single buffered']
    %7 = vsyncpa [#allocation3], 0
    %8 = vsyncpa [#allocation4], 0
    // Predicated region
    $region2: #{tpu_custom_call.1} parent=1 // pred_check
      _
    $region3: #{tpu_custom_call.1} parent=1 // pred_check_branch
      %10 = sbr.rel (0) target = $region5
    $region4: #{tpu_custom_call.1} parent=1 // pred_region
      _
    $region5: #{tpu_custom_call.1} parent=1 // pred_fallthru
      _
    // Predicated region
    $region6: #{tpu_custom_call.1} parent=1 // pred_check
      _
    $region7: #{tpu_custom_call.1} parent=1 // pred_check_branch
      %12 = sbr.rel (0) target = $region9
    $region8: #{tpu_custom_call.1} parent=1 // pred_region
      %14 = vsyncadd [#allocation3], 0
      %s16 = sshll.u32 %s1, 4
      %s17 = int_to_ptr.hbm [resolvable:$true] %s16
      %s18 = sshll.u32 [#allocation2], 4
      %s19 = int_to_ptr.vmem [resolvable:$true] %s18
      %21 = dma.hbm_to_vmem [thread:$0]  %s17, 256, %s19, [#allocation3]
    $region9: #{tpu_custom_call.1} parent=1 // pred_fallthru
      _
    // Predicated region
    $region10: #{tpu_custom_call.1} parent=1 // pred_check
      _
    $region11: #{tpu_custom_call.1} parent=1 // pred_check_branch
      %23 = sbr.rel (0) target = $region13
    $region12: #{tpu_custom_call.1} parent=1 // pred_region
      %25 = dma.done [#allocation3], 256
    $region13: #{tpu_custom_call.1} parent=1 // pred_fallthru
      _
    %v26 = vld [vmem:[#allocation2] sm:$0xff]
    %v27 = vld [vmem:[#allocation2 + $0x8] sm:$0xff]
    %v28 = vld [vmem:[%s0] sm:$0xff]
    %30 = vset.pattern.permute.xlu0 0
    %31 = vperm.xlu0 %30, %v28
    %v32 = vpop.permute.xlu0 %31
    %v34 = vmul.f32 %v26, %v32
    %v35 = vmul.f32 %v27, %v32
    %36 = vst [vmem:[#allocation5] sm:$0xff] %v34
    %37 = vst [vmem:[#allocation5 + $0x8] sm:$0xff] %v35
    // Predicated region
    $region14: #{tpu_custom_call.1} parent=1 // pred_check
      _
    $region15: #{tpu_custom_call.1} parent=1 // pred_check_branch
      %39 = sbr.rel (0) target = $region17
    $region16: #{tpu_custom_call.1} parent=1 // pred_region
      %41 = vsyncadd [#allocation4], 0
      %s43 = sshll.u32 [#allocation5], 4
      %s44 = int_to_ptr.vmem [resolvable:$true] %s43
      %s45 = sshll.u32 %s2, 4
      %s46 = int_to_ptr.hbm [resolvable:$true] %s45
      %48 = dma.vmem_to_hbm [thread:$0]  %s44, 256, %s46, [#allocation4]
    $region17: #{tpu_custom_call.1} parent=1 // pred_fallthru
      _
    // Predicated region
    $region18: #{tpu_custom_call.1} parent=1 // pred_check
      _
    $region19: #{tpu_custom_call.1} parent=1 // pred_check_branch
      %50 = sbr.rel (0) target = $region21
    $region20: #{tpu_custom_call.1} parent=1 // pred_region
      %52 = dma.done [#allocation4], 256
    $region21: #{tpu_custom_call.1} parent=1 // pred_fallthru
      _
    %53 = vsyncpa [#allocation3], 1
    %54 = vsyncpa [#allocation4], 1

</llo_original>
